<compile_context>
chip_gen: v6e
topology: v6e:2x2x1
jax: 0.10.0
libtpu: 0.0.40
codegen_flags: <defaults>
</compile_context>

<pallas_src>
import functools

import jax
import jax.numpy as jnp
from jax.experimental import pallas as pl
from jax.experimental.pallas import tpu as pltpu

# ---------------------------------------------------------------------------
# Problem sizes (small, consistent with the module's usage)
# ---------------------------------------------------------------------------
OBS_DIM = 12          # columns normalized by RunningMeanStd
EXTRA_DIM = 4         # trailing "extra_features" columns (not normalized)
IN_DIM = OBS_DIM + EXTRA_DIM
HIDDEN = 32
ACT_DIM = 4
HEAD_DIM = 2 * ACT_DIM + 1   # fused heads: [mu(4) | log_std(4) | value(1)]
LANES = 128                  # lane width; hidden dim is padded to this
EPS = 1e-8


def _round_up(x, m):
    return ((x + m - 1) // m) * m


# ---------------------------------------------------------------------------
# Pallas kernel: trunk + fused heads, params read from one packed VMEM slab.
# All slices are full 128 lanes wide -> no masked sub-tile loads.
# ---------------------------------------------------------------------------
def _actor_critic_kernel(x_ref, p_ref, out_ref, *, in_dim, act_dim,
                         r_b1, r_w2, r_b2, r_wh, r_bh):
    x = x_ref[...]                                           # [BT, in_dim]

    # Layer 1 (RunningMeanStd normalization pre-folded into w1/b1).
    w1 = p_ref[0:in_dim, :]                                  # [in_dim, 128]
    b1 = p_ref[r_b1:r_b1 + 1, :]                             # [1, 128]
    h1 = jnp.dot(x, w1, preferred_element_type=jnp.float32) + b1
    h1 = jnp.maximum(h1, 0.0)                                # padded lanes stay 0

    # Layer 2 (weight rows beyond HIDDEN are zero -> no contamination).
    w2 = p_ref[r_w2:r_w2 + LANES, :]                         # [128, 128]
    b2 = p_ref[r_b2:r_b2 + 1, :]
    h2 = jnp.dot(h1, w2, preferred_element_type=jnp.float32) + b2
    h2 = jnp.maximum(h2, 0.0)

    # Fused heads: one MXU pass producing a full 128-lane slab.
    # Lanes [0, act_dim) = mu, [act_dim, 2*act_dim) = log_std,
    # lane 2*act_dim = value, remaining lanes are zero.
    wh = p_ref[r_wh:r_wh + LANES, :]                         # [128, 128]
    bh = p_ref[r_bh:r_bh + 1, :]
    heads = jnp.dot(h2, wh, preferred_element_type=jnp.float32) + bh

    col = jax.lax.broadcasted_iota(jnp.int32, heads.shape, 1)
    is_std = (col >= act_dim) & (col < 2 * act_dim)
    out_ref[...] = jnp.where(is_std, jnp.exp(heads), heads)  # std = exp(log_std)


# ---------------------------------------------------------------------------
# Host-side parameter packing (fold normalization, fuse heads, one slab)
# ---------------------------------------------------------------------------
def pack_params(params):
    w1, b1 = params["w1"], params["b1"]
    in_dim, hidden = w1.shape
    act_dim = params["wm"].shape[1]
    obs_dim = params["rms_mean"].shape[0]

    # x_norm = x * scale + shift on obs columns, identity on extra columns.
    inv_std = jax.lax.rsqrt(params["rms_var"] + EPS)
    scale = jnp.concatenate(
        [inv_std, jnp.ones((in_dim - obs_dim,), jnp.float32)])
    shift = jnp.concatenate(
        [-params["rms_mean"] * inv_std,
         jnp.zeros((in_dim - obs_dim,), jnp.float32)])
    # TODO(synk): RunningMeanStd.normalize may additionally clip to [-c, c];
    # the clipping constant is config-dependent so it is omitted here.
    w1f = w1 * scale[:, None]
    b1f = b1 + shift[None, :] @ w1

    wh = jnp.concatenate([params["wm"], params["ws"], params["wv"]], axis=1)
    bh = jnp.concatenate([params["bm"], params["bs"], params["bv"]], axis=1)
    head_dim = wh.shape[1]

    # Sublane(8)-aligned row layout inside the [rows, 128] slab.  Hidden is
    # padded to the full 128 lanes so every kernel slice is lane-dense.
    r_b1 = _round_up(in_dim, 8)
    r_w2 = r_b1 + 8
    r_b2 = r_w2 + LANES
    r_wh = r_b2 + 8
    r_bh = r_wh + LANES
    rows = r_bh + 8                                       # multiple of 8

    slab = jnp.zeros((rows, LANES), jnp.float32)
    slab = slab.at[0:in_dim, 0:hidden].set(w1f)
    slab = slab.at[r_b1, 0:hidden].set(b1f[0])
    slab = slab.at[r_w2:r_w2 + hidden, 0:hidden].set(params["w2"])
    slab = slab.at[r_b2, 0:hidden].set(params["b2"][0])
    slab = slab.at[r_wh:r_wh + hidden, 0:head_dim].set(wh)
    slab = slab.at[r_bh, 0:head_dim].set(bh[0])

    layout = dict(in_dim=in_dim, act_dim=act_dim,
                  r_b1=r_b1, r_w2=r_w2, r_b2=r_b2, r_wh=r_wh, r_bh=r_bh)
    return slab, layout


# ---------------------------------------------------------------------------
# Wrapper factory: mirrors forward()'s (dist, value, h); Normal = (mean, std)
# ---------------------------------------------------------------------------
def make_actor_critic_forward(layout, slab_shape):
    in_dim = layout["in_dim"]
    act_dim = layout["act_dim"]
    kernel = functools.partial(_actor_critic_kernel, **layout)

    @jax.jit
    def forward(x, h, slab):
        b = x.shape[0]
        # Pad batch to a sublane-aligned tile; large batches tile at 128 rows
        # and shard across TensorCores via the parallel grid axis.
        bt = 8 if b <= 8 else 128
        b_pad = _round_up(b, bt)
        x_pad = jnp.pad(x, ((0, b_pad - b), (0, 0)))

        out = pl.pallas_call(
            kernel,
            out_shape=jax.ShapeDtypeStruct((b_pad, LANES), jnp.float32),
            grid=(b_pad // bt,),
            in_specs=[
                pl.BlockSpec((bt, in_dim), lambda i: (i, 0)),   # batch tile
                pl.BlockSpec(slab_shape, lambda i: (0, 0)),     # params, resident
            ],
            out_specs=pl.BlockSpec((bt, LANES), lambda i: (i, 0)),
            compiler_params=pltpu.CompilerParams(
                dimension_semantics=("parallel",)),
        )(x_pad, slab)

        mean = out[:b, 0:act_dim]
        std = out[:b, act_dim:2 * act_dim]
        value = out[:b, 2 * act_dim:2 * act_dim + 1]
        return (mean, std), value, h

    return forward


# ---------------------------------------------------------------------------
# Parameter init + pure-JAX reference of the module's forward semantics
# ---------------------------------------------------------------------------
def init_params(key):
    keys = jax.random.split(key, 5)

    def dense(k, fan_in, fan_out):
        lim = 1.0 / jnp.sqrt(fan_in)
        return jax.random.uniform(k, (fan_in, fan_out), jnp.float32, -lim, lim)

    return dict(
        # RunningMeanStd statistics (deterministic, non-trivial), obs cols only.
        rms_mean=0.1 * jnp.arange(OBS_DIM, dtype=jnp.float32),
        rms_var=1.0 + 0.05 * jnp.arange(OBS_DIM, dtype=jnp.float32),
        w1=dense(keys[0], IN_DIM, HIDDEN), b1=jnp.zeros((1, HIDDEN), jnp.float32),
        w2=dense(keys[1], HIDDEN, HIDDEN), b2=jnp.zeros((1, HIDDEN), jnp.float32),
        wm=dense(keys[2], HIDDEN, ACT_DIM), bm=jnp.zeros((1, ACT_DIM), jnp.float32),
        ws=dense(keys[3], HIDDEN, ACT_DIM),
        bs=jnp.full((1, ACT_DIM), -0.5, jnp.float32),
        wv=dense(keys[4], HIDDEN, 1), bv=jnp.zeros((1, 1), jnp.float32),
    )


def reference_forward(x, params):
    obs, extra = x[:, :OBS_DIM], x[:, OBS_DIM:]
    obs = (obs - params["rms_mean"]) * jax.lax.rsqrt(params["rms_var"] + EPS)
    xf = jnp.concatenate([obs, extra], axis=1)
    h1 = jnp.maximum(xf @ params["w1"] + params["b1"], 0.0)
    h2 = jnp.maximum(h1 @ params["w2"] + params["b2"], 0.0)
    mean = h2 @ params["wm"] + params["bm"]
    std = jnp.exp(h2 @ params["ws"] + params["bs"])
    value = h2 @ params["wv"] + params["bv"]
    return mean, std, value


if __name__ == "__main__":
    key = jax.random.PRNGKey(0)
    k_x, k_p = jax.random.split(key)

    B = 2
    x = jax.random.normal(k_x, (B, IN_DIM), jnp.float32)   # already flattened
    h = jnp.zeros((B, 1), jnp.float32)                      # hidden-state pass-through
    params = init_params(k_p)

    slab, layout = pack_params(params)                      # one-time host packing
    forward = make_actor_critic_forward(layout, slab.shape)

    (mean, std), value, h_out = forward(x, h, slab)
    jax.block_until_ready((mean, std, value, h_out))

    # Tolerance check against the pure-JAX reference (normalization folding
    # reassociates the math slightly).
    mean_r, std_r, value_r = reference_forward(x, params)
    assert mean.shape == (B, ACT_DIM)
    assert std.shape == (B, ACT_DIM)
    assert value.shape == (B, 1)
    assert jnp.allclose(mean, mean_r, rtol=1e-4, atol=1e-4)
    assert jnp.allclose(std, std_r, rtol=1e-4, atol=1e-4)
    assert jnp.allclose(value, value_r, rtol=1e-4, atol=1e-4)

    # Distribution glue (evaluate_action / deterministic_action) in plain JAX.
    action = mean  # deterministic_action
    log_prob = jnp.sum(
        -0.5 * ((action - mean) / std) ** 2 - jnp.log(std)
        - 0.5 * jnp.log(2.0 * jnp.pi),
        axis=-1, keepdims=True)
    entropy = 0.5 + 0.5 * jnp.log(2.0 * jnp.pi) + jnp.log(std)
    jax.block_until_ready((log_prob, entropy))
    assert log_prob.shape == (B, 1)

    print("KERNEL_OK")
</pallas_src>

<mosaic_0001>
module attributes {stable_mosaic.version = 11 : i64} {
  func.func @_actor_critic_kernel(%arg0: i32, %arg1: memref<8x16xf32, #tpu.memory_space<vmem>>, %arg2: memref<296x128xf32, #tpu.memory_space<vmem>>, %arg3: memref<8x128xf32, #tpu.memory_space<vmem>>) attributes {dimension_semantics = [#tpu.dimension_semantics<parallel>], iteration_bounds = array<i64: 1>, scalar_prefetch = 0 : i64, scratch_operands = 0 : i64, tpu.core_type = #tpu.core_type<tc>, window_params = [{transform_indices = @transform_0, window_bounds = array<i64: 8, 16>}, {pipeline_mode = #tpu.pipeline_mode<synchronous>, transform_indices = @transform_1, window_bounds = array<i64: 296, 128>}, {transform_indices = @transform_2, window_bounds = array<i64: 8, 128>}]} {
    %c0 = arith.constant 0 : index
    %c0_0 = arith.constant 0 : index
    %0 = vector.load %arg1[%c0, %c0_0] : memref<8x16xf32, #tpu.memory_space<vmem>>, vector<8x16xf32>
    %c0_1 = arith.constant 0 : index
    %c0_2 = arith.constant 0 : index
    %1 = vector.load %arg2[%c0_1, %c0_2] : memref<296x128xf32, #tpu.memory_space<vmem>>, vector<16x128xf32>
    %c16 = arith.constant 16 : index
    %c0_3 = arith.constant 0 : index
    %2 = vector.load %arg2[%c16, %c0_3] : memref<296x128xf32, #tpu.memory_space<vmem>>, vector<1x128xf32>
    %cst = arith.constant dense<0.000000e+00> : vector<8x128xf32>
    %3 = tpu.matmul %0, %1, %cst {dimension_numbers = #tpu.dot_dimension_numbers<[1], [0], [0], [1], [0, 0, 1, 1], [], []>} : vector<8x16xf32>, vector<16x128xf32>, vector<8x128xf32> -> vector<8x128xf32>
    %4 = vector.broadcast %2 : vector<1x128xf32> to vector<8x128xf32>
    %5 = arith.addf %3, %4 : vector<8x128xf32>
    %cst_4 = arith.constant 0.000000e+00 : f32
    %6 = vector.broadcast %cst_4 : f32 to vector<8x128xf32>
    %7 = arith.maximumf %5, %6 : vector<8x128xf32>
    %c24 = arith.constant 24 : index
    %c0_5 = arith.constant 0 : index
    %8 = vector.load %arg2[%c24, %c0_5] : memref<296x128xf32, #tpu.memory_space<vmem>>, vector<128x128xf32>
    %c152 = arith.constant 152 : index
    %c0_6 = arith.constant 0 : index
    %9 = vector.load %arg2[%c152, %c0_6] : memref<296x128xf32, #tpu.memory_space<vmem>>, vector<1x128xf32>
    %cst_7 = arith.constant dense<0.000000e+00> : vector<8x128xf32>
    %10 = tpu.matmul %7, %8, %cst_7 {dimension_numbers = #tpu.dot_dimension_numbers<[1], [0], [0], [1], [0, 0, 1, 1], [], []>} : vector<8x128xf32>, vector<128x128xf32>, vector<8x128xf32> -> vector<8x128xf32>
    %11 = vector.broadcast %9 : vector<1x128xf32> to vector<8x128xf32>
    %12 = arith.addf %10, %11 : vector<8x128xf32>
    %cst_8 = arith.constant 0.000000e+00 : f32
    %13 = vector.broadcast %cst_8 : f32 to vector<8x128xf32>
    %14 = arith.maximumf %12, %13 : vector<8x128xf32>
    %c160 = arith.constant 160 : index
    %c0_9 = arith.constant 0 : index
    %15 = vector.load %arg2[%c160, %c0_9] : memref<296x128xf32, #tpu.memory_space<vmem>>, vector<128x128xf32>
    %c288 = arith.constant 288 : index
    %c0_10 = arith.constant 0 : index
    %16 = vector.load %arg2[%c288, %c0_10] : memref<296x128xf32, #tpu.memory_space<vmem>>, vector<1x128xf32>
    %cst_11 = arith.constant dense<0.000000e+00> : vector<8x128xf32>
    %17 = tpu.matmul %14, %15, %cst_11 {dimension_numbers = #tpu.dot_dimension_numbers<[1], [0], [0], [1], [0, 0, 1, 1], [], []>} : vector<8x128xf32>, vector<128x128xf32>, vector<8x128xf32> -> vector<8x128xf32>
    %18 = vector.broadcast %16 : vector<1x128xf32> to vector<8x128xf32>
    %19 = arith.addf %17, %18 : vector<8x128xf32>
    %20 = tpu.iota {dimensions = array<i32: 1>} : vector<8x128xi32>
    %c4_i32 = arith.constant 4 : i32
    %21 = vector.broadcast %c4_i32 : i32 to vector<8x128xi32>
    %22 = arith.cmpi sge, %20, %21 : vector<8x128xi32>
    %c8_i32 = arith.constant 8 : i32
    %23 = vector.broadcast %c8_i32 : i32 to vector<8x128xi32>
    %24 = arith.cmpi slt, %20, %23 : vector<8x128xi32>
    %25 = arith.andi %22, %24 : vector<8x128xi1>
    %26 = math.exp %19 : vector<8x128xf32>
    %27 = arith.select %25, %26, %19 : vector<8x128xi1>, vector<8x128xf32>
    %c0_12 = arith.constant 0 : index
    %c0_13 = arith.constant 0 : index
    %28 = vector.load %arg3[%c0_12, %c0_13] : memref<8x128xf32, #tpu.memory_space<vmem>>, vector<8x128xf32>
    tpu.vector_store %arg3[%c0_12, %c0_13], %27 {strides = array<i32>} : memref<8x128xf32, #tpu.memory_space<vmem>>, vector<8x128xf32>,
    return
  }
  func.func @transform_0(%arg0: i32) -> (i32, i32) {
    %c0_i32 = arith.constant 0 : i32
    %c0_i32_0 = arith.constant 0 : i32
    return %arg0, %c0_i32 : i32, i32
  }
  func.func @transform_1(%arg0: i32) -> (i32, i32) {
    %c0_i32 = arith.constant 0 : i32
    %c0_i32_0 = arith.constant 0 : i32
    %c0_i32_1 = arith.constant 0 : i32
    return %c0_i32, %c0_i32_0 : i32, i32
  }
  func.func @transform_2(%arg0: i32) -> (i32, i32) {
    %c0_i32 = arith.constant 0 : i32
    %c0_i32_0 = arith.constant 0 : i32
    return %arg0, %c0_i32 : i32, i32
  }
}

</mosaic_0001>

<llo_original>
// kernel: forward.1
$region0: #{forward.1}
  #allocation0 [shape = 'u32[]', space=smem, size = 0x4, offset = 0x4, fixed_abs, tag = 'smem constant byte address 0x4 - core index']
  #allocation1 [shape = 'u32[144,128]{1,0:T(1,128)}', space=vmem, size = 0x12000, scoped, tag = 'internal scratch']
  %s0 = inlined_call_operand.vmem [shape: f32[8,16], index: 0, kind: input, shape index: {}]
  %s1 = inlined_call_operand.hbm [shape: f32[296,128], index: 1, kind: input, shape index: {}]
  %s2 = inlined_call_operand.vmem [shape: f32[8,128], index: 2, kind: output, shape index: {}]
  %s3 = sld [smem:[#allocation0]]
  $region22: #{forward.1} parent=0
    _
  %s5 = ssub.s32 1, %s3
  %s6 = scalar_select 0, %s5, %s3
  $region1: #{forward.1} parent=0
    #allocation2 [shape = 'u8[151552]{0}', space=vmem, size = 0x25000, scoped, tag = 'input window, operand 1, single buffered']
    #allocation3 [shape = 's32[1]{0}', space=sflag, size = 0x4, scoped, tag = 'scoped memory for forward.1']
    %7 = vsyncpa [#allocation3], 0
    // Predicated region
    $region2: #{forward.1} parent=1 // pred_check
      _
    $region3: #{forward.1} parent=1 // pred_check_branch
      %9 = sbr.rel (0) target = $region5
    $region4: #{forward.1} parent=1 // pred_region
      _
    $region5: #{forward.1} parent=1 // pred_fallthru
      _
    // Predicated region
    $region6: #{forward.1} parent=1 // pred_check
      _
    $region7: #{forward.1} parent=1 // pred_check_branch
      %11 = sbr.rel (0) target = $region9
    $region8: #{forward.1} parent=1 // pred_region
      %s13 = ssub.s32 4736, 4736
      %14 = vsyncadd [#allocation3], %s13
      %s15 = sshll.u32 [#allocation2], 4
      %s16 = int_to_ptr.vmem [resolvable:$true] %s15
      %21 = dma.hbm_to_vmem [thread:$0]  %s1, 4736, %s16, [#allocation3], 128, 128, 8
    $region9: #{forward.1} parent=1 // pred_fallthru
      _
    // Predicated region
    $region10: #{forward.1} parent=1 // pred_check
      _
    $region11: #{forward.1} parent=1 // pred_check_branch
      %23 = sbr.rel (0) target = $region13
    $region12: #{forward.1} parent=1 // pred_region
      %24 = dma.done [#allocation3], 4736
    $region13: #{forward.1} parent=1 // pred_fallthru
      _
    %v25 = vld [vmem:[%s0] sm:$0xff]
    %v26 = vld [vmem:[#allocation2] sm:$0xff]
    %v27 = vld [vmem:[#allocation2 + $0x8] sm:$0xff]
    %v28 = vld [vmem:[#allocation2 + $0x10] sm:$0x1]
    %v29 = vlaneseq
    %v30 = vshrl.u32 %v29, 7
    %v31 = vsub.s32 0, %v30
    %v32 = vrot.slane %v28, %v31
    %vm33 = vcmask 130048
    %v35 = vsel %vm33, %v25, 0
    %37 = vmatprep.subr.mxu0 0.0
    %38 = vmatpush1.msra.mxu0 0.0
    %39 = vmatprep.subr.mxu0 0.0
    %40 = vmatpush1.msra.mxu0 0.0
    %41 = vmatprep.subr.mxu0 0.0
    %42 = vmatpush1.msra.mxu0 0.0
    %43 = vmatprep.subr.mxu0 0.0
    %44 = vmatpush1.msra.mxu0 0.0
    %45 = vmatprep.subr.mxu0 0.0
    %46 = vmatpush1.msra.mxu0 0.0
    %47 = vmatprep.subr.mxu0 0.0
    %48 = vmatpush1.msra.mxu0 0.0
    %49 = vmatprep.subr.mxu0 0.0
    %50 = vmatpush1.msra.mxu0 0.0
    %51 = vmatprep.subr.mxu0 0.0
    %52 = vmatpush1.msra.mxu0 0.0
    %53 = vmatprep.subr.mxu0 0.0
    %54 = vmatpush1.msra.mxu0 0.0
    %55 = vmatprep.subr.mxu0 0.0
    %56 = vmatpush1.msra.mxu0 0.0
    %57 = vmatprep.subr.mxu0 0.0
    %58 = vmatpush1.msra.mxu0 0.0
    %59 = vmatprep.subr.mxu0 0.0
    %60 = vmatpush1.msra.mxu0 0.0
    %61 = vmatprep.subr.mxu0 0.0
    %62 = vmatpush1.msra.mxu0 0.0
    %63 = vmatprep.subr.mxu0 0.0
    %64 = vmatpush1.msra.mxu0 0.0
    %65 = vmatprep.subr.mxu0 0.0
    %66 = vmatpush1.msra.mxu0 %v27
    %67 = vmatprep.subr.mxu0 0.0
    %68 = vmatpush1.msra.mxu0 %v26
    %69 = vmatprep.subr.mxu0 0.0
    %70 = vmatpush2.msra.mxu0 0.0
    %71 = vmatprep.subr.mxu0 0.0
    %72 = vmatpush2.msra.mxu0 0.0
    %73 = vmatprep.subr.mxu0 0.0
    %74 = vmatpush2.msra.mxu0 0.0
    %75 = vmatprep.subr.mxu0 0.0
    %76 = vmatpush2.msra.mxu0 0.0
    %77 = vmatprep.subr.mxu0 0.0
    %78 = vmatpush2.msra.mxu0 0.0
    %79 = vmatprep.subr.mxu0 0.0
    %80 = vmatpush2.msra.mxu0 0.0
    %81 = vmatprep.subr.mxu0 0.0
    %82 = vmatpush2.msra.mxu0 0.0
    %83 = vmatprep.subr.mxu0 0.0
    %84 = vmatpush2.msra.mxu0 0.0
    %85 = vmatprep.subr.mxu0 0.0
    %86 = vmatpush2.msra.mxu0 0.0
    %87 = vmatprep.subr.mxu0 0.0
    %88 = vmatpush2.msra.mxu0 0.0
    %89 = vmatprep.subr.mxu0 0.0
    %90 = vmatpush2.msra.mxu0 0.0
    %91 = vmatprep.subr.mxu0 0.0
    %92 = vmatpush2.msra.mxu0 0.0
    %93 = vmatprep.subr.mxu0 0.0
    %94 = vmatpush2.msra.mxu0 0.0
    %95 = vmatprep.subr.mxu0 0.0
    %96 = vmatpush2.msra.mxu0 0.0
    %97 = vmatprep.subr.mxu0 0.0
    %98 = vmatpush2.msra.mxu0 0.0
    %99 = vmatprep.subr.mxu0 0.0
    %100 = vmatpush2.msra.mxu0 0.0
    %101 = vmatprep.mubr.f32.mxu0 0.0
    %102 = vmatmul.mubr.f32.gmra.mxu0 %v35
    %v103 = vpop.f32.mrf.mxu0
    %v104 = vadd.f32 %v32, %v103
    %v105 = vpop.f32.mrf.mxu0
    %106 = vdwg.mxu0
    %v107 = vmax.f32 %v104, 0.0
    %v108 = vld [vmem:[#allocation2 + $0x18] sm:$0xff]
    %v109 = vld [vmem:[#allocation2 + $0x20] sm:$0xff]
    %v110 = vld [vmem:[#allocation2 + $0x28] sm:$0xff]
    %v111 = vld [vmem:[#allocation2 + $0x30] sm:$0xff]
    %v112 = vld [vmem:[#allocation2 + $0x38] sm:$0xff]
    %v113 = vld [vmem:[#allocation2 + $0x40] sm:$0xff]
    %v114 = vld [vmem:[#allocation2 + $0x48] sm:$0xff]
    %v115 = vld [vmem:[#allocation2 + $0x50] sm:$0xff]
    %v116 = vld [vmem:[#allocation2 + $0x58] sm:$0xff]
    %v117 = vld [vmem:[#allocation2 + $0x60] sm:$0xff]
    %v118 = vld [vmem:[#allocation2 + $0x68] sm:$0xff]
    %v119 = vld [vmem:[#allocation2 + $0x70] sm:$0xff]
    %v120 = vld [vmem:[#allocation2 + $0x78] sm:$0xff]
    %v121 = vld [vmem:[#allocation2 + $0x80] sm:$0xff]
    %v122 = vld [vmem:[#allocation2 + $0x88] sm:$0xff]
    %v123 = vld [vmem:[#allocation2 + $0x90] sm:$0xff]
    %v124 = vld [vmem:[#allocation2 + $0x98] sm:$0x1]
    %v125 = vlaneseq
    %v126 = vshrl.u32 %v125, 7
    %v127 = vsub.s32 0, %v126
    %v128 = vrot.slane %v124, %v127
    %129 = vmatprep.subr.mxu0 0.0
    %130 = vmatpush1.msra.mxu0 %v123
    %131 = vmatprep.subr.mxu0 0.0
    %132 = vmatpush1.msra.mxu0 %v122
    %133 = vmatprep.subr.mxu0 0.0
    %134 = vmatpush1.msra.mxu0 %v121
    %135 = vmatprep.subr.mxu0 0.0
    %136 = vmatpush1.msra.mxu0 %v120
    %137 = vmatprep.subr.mxu0 0.0
    %138 = vmatpush1.msra.mxu0 %v119
    %139 = vmatprep.subr.mxu0 0.0
    %140 = vmatpush1.msra.mxu0 %v118
    %141 = vmatprep.subr.mxu0 0.0
    %142 = vmatpush1.msra.mxu0 %v117
    %143 = vmatprep.subr.mxu0 0.0
    %144 = vmatpush1.msra.mxu0 %v116
    %145 = vmatprep.subr.mxu0 0.0
    %146 = vmatpush1.msra.mxu0 %v115
    %147 = vmatprep.subr.mxu0 0.0
    %148 = vmatpush1.msra.mxu0 %v114
    %149 = vmatprep.subr.mxu0 0.0
    %150 = vmatpush1.msra.mxu0 %v113
    %151 = vmatprep.subr.mxu0 0.0
    %152 = vmatpush1.msra.mxu0 %v112
    %153 = vmatprep.subr.mxu0 0.0
    %154 = vmatpush1.msra.mxu0 %v111
    %155 = vmatprep.subr.mxu0 0.0
    %156 = vmatpush1.msra.mxu0 %v110
    %157 = vmatprep.subr.mxu0 0.0
    %158 = vmatpush1.msra.mxu0 %v109
    %159 = vmatprep.subr.mxu0 0.0
    %160 = vmatpush1.msra.mxu0 %v108
    %161 = vmatprep.subr.mxu0 0.0
    %162 = vmatpush2.msra.mxu0 0.0
    %163 = vmatprep.subr.mxu0 0.0
    %164 = vmatpush2.msra.mxu0 0.0
    %165 = vmatprep.subr.mxu0 0.0
    %166 = vmatpush2.msra.mxu0 0.0
    %167 = vmatprep.subr.mxu0 0.0
    %168 = vmatpush2.msra.mxu0 0.0
    %169 = vmatprep.subr.mxu0 0.0
    %170 = vmatpush2.msra.mxu0 0.0
    %171 = vmatprep.subr.mxu0 0.0
    %172 = vmatpush2.msra.mxu0 0.0
    %173 = vmatprep.subr.mxu0 0.0
    %174 = vmatpush2.msra.mxu0 0.0
    %175 = vmatprep.subr.mxu0 0.0
    %176 = vmatpush2.msra.mxu0 0.0
    %177 = vmatprep.subr.mxu0 0.0
    %178 = vmatpush2.msra.mxu0 0.0
    %179 = vmatprep.subr.mxu0 0.0
    %180 = vmatpush2.msra.mxu0 0.0
    %181 = vmatprep.subr.mxu0 0.0
    %182 = vmatpush2.msra.mxu0 0.0
    %183 = vmatprep.subr.mxu0 0.0
    %184 = vmatpush2.msra.mxu0 0.0
    %185 = vmatprep.subr.mxu0 0.0
    %186 = vmatpush2.msra.mxu0 0.0
    %187 = vmatprep.subr.mxu0 0.0
    %188 = vmatpush2.msra.mxu0 0.0
    %189 = vmatprep.subr.mxu0 0.0
    %190 = vmatpush2.msra.mxu0 0.0
    %191 = vmatprep.subr.mxu0 0.0
    %192 = vmatpush2.msra.mxu0 0.0
    %193 = vmatprep.mubr.f32.mxu0 0.0
    %194 = vmatmul.mubr.f32.gmra.mxu0 %v107
    %v195 = vpop.f32.mrf.mxu0
    %v196 = vadd.f32 %v128, %v195
    %v197 = vpop.f32.mrf.mxu0
    %198 = vdwg.mxu0
    %v199 = vmax.f32 %v196, 0.0
    %v200 = vld [vmem:[#allocation2 + $0xa0] sm:$0xff]
    %v201 = vld [vmem:[#allocation2 + $0xa8] sm:$0xff]
    %v202 = vld [vmem:[#allocation2 + $0xb0] sm:$0xff]
    %v203 = vld [vmem:[#allocation2 + $0xb8] sm:$0xff]
    %v204 = vld [vmem:[#allocation2 + $0xc0] sm:$0xff]
    %v205 = vld [vmem:[#allocation2 + $0xc8] sm:$0xff]
    %v206 = vld [vmem:[#allocation2 + $0xd0] sm:$0xff]
    %v207 = vld [vmem:[#allocation2 + $0xd8] sm:$0xff]
    %v208 = vld [vmem:[#allocation2 + $0xe0] sm:$0xff]
    %v209 = vld [vmem:[#allocation2 + $0xe8] sm:$0xff]
    %v210 = vld [vmem:[#allocation2 + $0xf0] sm:$0xff]
    %v211 = vld [vmem:[#allocation2 + $0xf8] sm:$0xff]
    %v212 = vld [vmem:[#allocation2 + $0x100] sm:$0xff]
    %v213 = vld [vmem:[#allocation2 + $0x108] sm:$0xff]
    %v214 = vld [vmem:[#allocation2 + $0x110] sm:$0xff]
    %v215 = vld [vmem:[#allocation2 + $0x118] sm:$0xff]
    %v216 = vld [vmem:[#allocation2 + $0x120] sm:$0x1]
    %v217 = vlaneseq
    %v218 = vshrl.u32 %v217, 7
    %v219 = vsub.s32 0, %v218
    %v220 = vrot.slane %v216, %v219
    %221 = vmatprep.subr.mxu0 0.0
    %222 = vmatpush1.msra.mxu0 %v215
    %223 = vmatprep.subr.mxu0 0.0
    %224 = vmatpush1.msra.mxu0 %v214
    %225 = vmatprep.subr.mxu0 0.0
    %226 = vmatpush1.msra.mxu0 %v213
    %227 = vmatprep.subr.mxu0 0.0
    %228 = vmatpush1.msra.mxu0 %v212
    %229 = vmatprep.subr.mxu0 0.0
    %230 = vmatpush1.msra.mxu0 %v211
    %231 = vmatprep.subr.mxu0 0.0
    %232 = vmatpush1.msra.mxu0 %v210
    %233 = vmatprep.subr.mxu0 0.0
    %234 = vmatpush1.msra.mxu0 %v209
    %235 = vmatprep.subr.mxu0 0.0
    %236 = vmatpush1.msra.mxu0 %v208
    %237 = vmatprep.subr.mxu0 0.0
    %238 = vmatpush1.msra.mxu0 %v207
    %239 = vmatprep.subr.mxu0 0.0
    %240 = vmatpush1.msra.mxu0 %v206
    %241 = vmatprep.subr.mxu0 0.0
    %242 = vmatpush1.msra.mxu0 %v205
    %243 = vmatprep.subr.mxu0 0.0
    %244 = vmatpush1.msra.mxu0 %v204
    %245 = vmatprep.subr.mxu0 0.0
    %246 = vmatpush1.msra.mxu0 %v203
    %247 = vmatprep.subr.mxu0 0.0
    %248 = vmatpush1.msra.mxu0 %v202
    %249 = vmatprep.subr.mxu0 0.0
    %250 = vmatpush1.msra.mxu0 %v201
    %251 = vmatprep.subr.mxu0 0.0
    %252 = vmatpush1.msra.mxu0 %v200
    %253 = vmatprep.subr.mxu0 0.0
    %254 = vmatpush2.msra.mxu0 0.0
    %255 = vmatprep.subr.mxu0 0.0
    %256 = vmatpush2.msra.mxu0 0.0
    %257 = vmatprep.subr.mxu0 0.0
    %258 = vmatpush2.msra.mxu0 0.0
    %259 = vmatprep.subr.mxu0 0.0
    %260 = vmatpush2.msra.mxu0 0.0
    %261 = vmatprep.subr.mxu0 0.0
    %262 = vmatpush2.msra.mxu0 0.0
    %263 = vmatprep.subr.mxu0 0.0
    %264 = vmatpush2.msra.mxu0 0.0
    %265 = vmatprep.subr.mxu0 0.0
    %266 = vmatpush2.msra.mxu0 0.0
    %267 = vmatprep.subr.mxu0 0.0
    %268 = vmatpush2.msra.mxu0 0.0
    %269 = vmatprep.subr.mxu0 0.0
    %270 = vmatpush2.msra.mxu0 0.0
    %271 = vmatprep.subr.mxu0 0.0
    %272 = vmatpush2.msra.mxu0 0.0
    %273 = vmatprep.subr.mxu0 0.0
    %274 = vmatpush2.msra.mxu0 0.0
    %275 = vmatprep.subr.mxu0 0.0
    %276 = vmatpush2.msra.mxu0 0.0
    %277 = vmatprep.subr.mxu0 0.0
    %278 = vmatpush2.msra.mxu0 0.0
    %279 = vmatprep.subr.mxu0 0.0
    %280 = vmatpush2.msra.mxu0 0.0
    %281 = vmatprep.subr.mxu0 0.0
    %282 = vmatpush2.msra.mxu0 0.0
    %283 = vmatprep.subr.mxu0 0.0
    %284 = vmatpush2.msra.mxu0 0.0
    %285 = vmatprep.mubr.f32.mxu0 0.0
    %286 = vmatmul.mubr.f32.gmra.mxu0 %v199
    %v287 = vpop.f32.mrf.mxu0
    %v288 = vadd.f32 %v220, %v287
    %v289 = vpop.f32.mrf.mxu0
    %290 = vdwg.mxu0
    %v291 = vlaneseq
    %v292 = vand.u32 %v291, 127
    %vm293 = vcmp.ge.s32.totalorder %v292, 4
    %vm294 = vcmp.lt.s32.totalorder %v292, 8
    %vm295 = vmand %vm293, %vm294
    %v296 = vmul.f32 %v288, 1.442695
    %v297 = vpow.pop %v296
    %v298 = vsel %vm295, %v297, %v288
    %299 = vst [vmem:[%s2] sm:$0xff] %v298
    // Predicated region
    $region14: #{forward.1} parent=1 // pred_check
      _
    $region15: #{forward.1} parent=1 // pred_check_branch
      %301 = sbr.rel (0) target = $region17
    $region16: #{forward.1} parent=1 // pred_region
      _
    $region17: #{forward.1} parent=1 // pred_fallthru
      _
    // Predicated region
    $region18: #{forward.1} parent=1 // pred_check
      _
    $region19: #{forward.1} parent=1 // pred_check_branch
      %303 = sbr.rel (0) target = $region21
    $region20: #{forward.1} parent=1 // pred_region
      _
    $region21: #{forward.1} parent=1 // pred_fallthru
      _
    %304 = vsyncpa [#allocation3], 1

</llo_original>
